<compile_context>
chip_gen: v7x
topology: tpu7x:2x2x1
jax: 0.10.0
libtpu: 0.0.40
codegen_flags: <defaults>
</compile_context>

<pallas_src>
import functools
import math

import jax
import jax.numpy as jnp
from jax import lax
from jax.experimental import pallas as pl
from jax.experimental.pallas import tpu as pltpu

# ---- AAM hyper-parameters (AAM(200, 0.2, 10); n_class is unused by the math) ----
_M = 0.2
_S = 10.0
_COS_M = math.cos(_M)
_SIN_M = math.sin(_M)
_TH = math.cos(math.pi - _M)
_MM = math.sin(math.pi - _M) * _M
_EPS = 1e-12  # F.normalize eps

_LANE = 128
_MIB = 1024 * 1024


def _round_up(x, m):
    return ((x + m - 1) // m) * m


def _tpu_vmem_capacity_bytes():
    """Per-TensorCore VMEM capacity; conservative 64 MiB (v7x) if the query fails."""
    try:
        return int(pltpu.get_tpu_info().vmem_capacity_bytes)
    except Exception:  # pragma: no cover - older runtimes / CPU tracing
        return 64 * _MIB


def _resident_spec(shape):
    """Full-array resident input with a constant index_map, single-buffered.

    The block never changes across grid steps, so the default double buffer would just
    double the feature residency (perf review item 1)."""
    index_map = lambda i: (0,) * len(shape)
    try:
        return pl.BlockSpec(shape, index_map, pipeline_mode=pl.Buffered(1))
    except (AttributeError, TypeError, ValueError):
        return pl.BlockSpec(shape, index_map)


def _row_l2_normalize(x, eps=_EPS):
    """F.normalize(x, p=2, dim=-1) = x / max(||x||, eps), via one rsqrt per row."""
    ssq = jnp.sum(x * x, axis=-1, keepdims=True)
    return x * lax.rsqrt(jnp.maximum(ssq, eps * eps))


def _aam_direction_sum(logits, diag, axis, class_mask=None, sample_mask=None):
    """Sum over samples of (logsumexp - target_logit) for AAM with identity labels.

    `logits` is an f32 block; `axis` is the class axis (axis=0 == the transposed problem
    on the same block, so logits_per_text is never materialized).  `diag` holds the
    per-sample target logit (the global diagonal), already oriented like this direction's
    per-sample vectors.  Only the target entry needs sqrt/phi (O(samples) work); its
    substitution is folded into the logsumexp as a correction term.  S is folded into the
    per-sample normalization (one fewer full-block multiply per direction).
    """
    ssq = jnp.sum(logits * logits, axis=axis, keepdims=True)
    inv = lax.rsqrt(jnp.maximum(ssq, _EPS * _EPS))           # AAM: F.normalize(logits)
    z = logits * (_S * inv)                                   # == S * cosine
    cos_d = diag * inv
    sin_d = jnp.sqrt(jnp.clip(1.0 - cos_d * cos_d, 0.0, 1.0))
    phi_d = jnp.where(cos_d - _TH > 0.0, cos_d * _COS_M - sin_d * _SIN_M, cos_d - _MM)
    if class_mask is not None:                 # padded classes: drop from max & sum-exp
        z = jnp.where(class_mask, z, -jnp.inf)
    m = jnp.max(z, axis=axis, keepdims=True)
    sumexp = jnp.sum(jnp.exp(z - m), axis=axis, keepdims=True)
    # Replace the diagonal's contribution exp(S*cos_d) by exp(S*phi_d).
    sumexp = sumexp + (jnp.exp(_S * phi_d - m) - jnp.exp(_S * cos_d - m))
    per_sample = m + jnp.log(sumexp) - _S * phi_d             # CE with target logit S*phi_d
    if sample_mask is not None:                # padded samples contribute nothing
        per_sample = per_sample * sample_mask
    return jnp.sum(per_sample)


def _clip_aam_fused_kernel(img_ref, txt_ref, diag_col_ref, diag_row_ref, out_ref):
    """Fully-resident path: ONE (N, N) matmul; loss_t from the same matrix via axis=0."""
    logits = lax.dot_general(img_ref[...], txt_ref[...], (((1,), (1,)), ((), ())),
                             preferred_element_type=jnp.float32)       # (N, N) f32
    n = logits.shape[0]
    total = (_aam_direction_sum(logits, diag_col_ref[...], axis=1)     # image -> text
             + _aam_direction_sum(logits, diag_row_ref[...], axis=0))  # text -> image
    out_ref[0, 0] = total / (2.0 * n)


def _clip_aam_tiled_kernel(img_ref, txt_ref, diag_ref, out_ref, *, tm, n_valid):
    """Row-tiled path for large N: only (tm, Np) logits blocks are ever live.

    Padded rows/columns (N rounded up to the tile granularity) are masked so awkward
    batch sizes still run with MXU-sized tiles.  The transposed direction's (tm, Np)
    block (txt rows @ img.T) is recomputed per tile -- cheaper than an (N, N) HBM
    round-trip and keeps VMEM bounded.
    """
    i = pl.program_id(0)
    row_start = pl.multiple_of(i * tm, tm)
    n_pad = img_ref.shape[0]

    img_tile = img_ref[pl.ds(row_start, tm), :]                # (tm, Dp)
    txt_tile = txt_ref[pl.ds(row_start, tm), :]                # (tm, Dp)
    diag_tile = diag_ref[pl.ds(row_start, tm), :]              # (tm, 1) target logits

    if n_pad != n_valid:   # static: padding exists -> mask padded classes / samples
        class_mask = lax.broadcasted_iota(jnp.int32, (1, n_pad), 1) < n_valid
        row_ids = row_start + lax.broadcasted_iota(jnp.int32, (tm, 1), 0)
        sample_mask = (row_ids < n_valid).astype(jnp.float32)
    else:
        class_mask = None
        sample_mask = None

    def direction(a_tile, b_ref):
        logits = lax.dot_general(a_tile, b_ref[...], (((1,), (1,)), ((), ())),
                                 preferred_element_type=jnp.float32)   # (tm, Np) f32
        return _aam_direction_sum(logits, diag_tile, axis=1,
                                  class_mask=class_mask, sample_mask=sample_mask)

    total = direction(img_tile, txt_ref) + direction(txt_tile, img_ref)
    # Lane-dense (1, 8, 128) output slab per row tile; wrapper reads [:, 0, 0].
    out_ref[...] = jnp.full(out_ref.shape, total, dtype=jnp.float32)


def margin_clip_loss(image_features, text_features, logit_scale, label=None, *,
                     compute_dtype=jnp.bfloat16, max_fused_n=None, row_tile=None):
    """Returns (total_loss, logit_scale), matching margin_ClipLoss.forward
    (world_size == 1).  `label` is accepted for API parity but unused (arange labels)."""
    del label
    img = jnp.asarray(image_features, jnp.float32)
    txt = jnp.asarray(text_features, jnp.float32)
    n, d = img.shape

    # ---- chip-dependent budgets: 128 MiB VMEM on v5e/v6e, 64 MiB per TC on v7x ----
    vmem_cap = _tpu_vmem_capacity_bytes()
    big_vmem = vmem_cap >= 100 * _MIB
    vmem_limit = int(max(32 * _MIB, min(vmem_cap - 12 * _MIB, 112 * _MIB)))
    if max_fused_n is None:
        max_fused_n = 2048 if big_vmem else 1024

    # ---- O(N*D) prologue (not the hot path): F.normalize + cast + lane-dense pad on D.
    # logit_scale is skipped: AAM re-normalizes each sample's logits, so it cancels.
    # TODO(synk): fuse normalize/cast/pad into a small preprocessing Pallas kernel to save
    # one HBM round-trip over the features.
    img_n = _row_l2_normalize(img).astype(compute_dtype)
    txt_n = _row_l2_normalize(txt).astype(compute_dtype)
    d_pad = _round_up(d, _LANE)
    if d_pad != d:
        img_n = jnp.pad(img_n, ((0, 0), (0, d_pad - d)))
        txt_n = jnp.pad(txt_n, ((0, 0), (0, d_pad - d)))
    itemsize = jnp.dtype(compute_dtype).itemsize

    # Per-sample target logits diag[i] = <img_i, txt_i>: one O(N*D) reduction shared by
    # both directions and both kernels (replaces per-block iota/where diag extraction).
    diag = jnp.sum(img_n.astype(jnp.float32) * txt_n.astype(jnp.float32), axis=-1)  # (N,)

    use_fused = (n <= max_fused_n) and (row_tile is None)
    if use_fused:
        # (N,N) logits + ~3 same-size temporaries + both feature matrices must fit VMEM.
        use_fused = 2 * n * d_pad * itemsize + 4 * n * n * 4 <= vmem_limit

    if use_fused:
        cost = pl.CostEstimate(flops=int(2 * n * n * d_pad),
                               transcendentals=int(2 * n * n),
                               bytes_accessed=int(2 * n * d_pad * itemsize + 8 * n + 4))
        out = pl.pallas_call(
            _clip_aam_fused_kernel,
            out_shape=jax.ShapeDtypeStruct((1, 1), jnp.float32),
            in_specs=[pl.BlockSpec(memory_space=pltpu.MemorySpace.VMEM),
                      pl.BlockSpec(memory_space=pltpu.MemorySpace.VMEM),
                      pl.BlockSpec(memory_space=pltpu.MemorySpace.VMEM),
                      pl.BlockSpec(memory_space=pltpu.MemorySpace.VMEM)],
            out_specs=pl.BlockSpec(memory_space=pltpu.MemorySpace.SMEM),
            compiler_params=pltpu.CompilerParams(vmem_limit_bytes=vmem_limit),
            cost_estimate=cost,
        )(img_n, txt_n, diag[:, None], diag[None, :])
        return out[0, 0], jnp.asarray(logit_scale, jnp.float32)

    # ---- Row-tiled path: pad N to the tile granularity and mask padded rows/cols ----
    granularity = row_tile if row_tile is not None else 256
    n_pad = _round_up(n, granularity)
    if n_pad != n:
        img_n = jnp.pad(img_n, ((0, n_pad - n), (0, 0)))
        txt_n = jnp.pad(txt_n, ((0, n_pad - n), (0, 0)))
        diag = jnp.pad(diag, ((0, n_pad - n),))

    if row_tile is not None:
        tm = row_tile
    else:
        tm = 256
        resident = 2 * n_pad * d_pad * itemsize          # single-buffered, per TensorCore
        for cand in ((512, 256) if big_vmem else (256,)):
            if n_pad % cand == 0 and resident + 4 * cand * n_pad * 4 <= vmem_limit:
                tm = cand
                break
        # TODO(synk): if both resident feature matrices cannot fit one TensorCore's VMEM
        # (huge N on v7x), a two-pass column-tiled variant (stream column tiles: pass 1
        # row norms/max, pass 2 sum-exp) is required; not implemented here.
    n_tiles = n_pad // tm

    cost = pl.CostEstimate(flops=int(4 * n_pad * n_pad * d_pad),
                           transcendentals=int(2 * n_pad * n_pad),
                           bytes_accessed=int(2 * n_pad * d_pad * itemsize + 4 * n_pad
                                              + n_tiles * 8 * _LANE * 4))

    def _tiled_call(feature_spec):
        return pl.pallas_call(
            functools.partial(_clip_aam_tiled_kernel, tm=tm, n_valid=n),
            out_shape=jax.ShapeDtypeStruct((n_tiles, 8, _LANE), jnp.float32),
            grid=(n_tiles,),
            in_specs=[feature_spec((n_pad, d_pad)),
                      feature_spec((n_pad, d_pad)),
                      feature_spec((n_pad, 1))],
            out_specs=pl.BlockSpec((1, 8, _LANE), lambda i: (i, 0, 0)),
            compiler_params=pltpu.CompilerParams(
                dimension_semantics=("parallel",),   # v7x: the two TCs split the tiles
                vmem_limit_bytes=vmem_limit),
            cost_estimate=cost,
        )(img_n, txt_n, diag[:, None])

    try:
        partials = _tiled_call(_resident_spec)                 # single-buffered residents
    except Exception:
        # Fallback if this JAX build rejects pl.Buffered(1): default double buffering.
        partials = _tiled_call(lambda s: pl.BlockSpec(s, lambda i: (0,) * len(s)))

    loss = jnp.sum(partials[:, 0, 0]) / (2.0 * n)
    return loss, jnp.asarray(logit_scale, jnp.float32)


def _reference_margin_clip_loss(image_features, text_features, logit_scale):
    """Pure-JAX transcription of the PyTorch module (world_size == 1, f32)."""
    def l2norm(x):
        return x / jnp.maximum(jnp.linalg.norm(x, axis=-1, keepdims=True), _EPS)

    def aam(x):
        num = x.shape[0]
        cosine = l2norm(x)
        sine = jnp.sqrt(jnp.clip(1.0 - cosine * cosine, 0.0, 1.0))
        phi = jnp.where(cosine - _TH > 0.0, cosine * _COS_M - sine * _SIN_M, cosine - _MM)
        one_hot = jnp.eye(num, dtype=x.dtype)
        out = (one_hot * phi + (1.0 - one_hot) * cosine) * _S
        logp = jax.nn.log_softmax(out, axis=-1)
        return -jnp.mean(jnp.diag(logp))          # CrossEntropy with labels arange(num)

    imgn = l2norm(jnp.asarray(image_features, jnp.float32))
    txtn = l2norm(jnp.asarray(text_features, jnp.float32))
    lpi = logit_scale * imgn @ txtn.T
    lpt = logit_scale * txtn @ imgn.T
    return (aam(lpi) + aam(lpt)) / 2.0


if __name__ == "__main__":
    key = jax.random.PRNGKey(0)
    k1, k2, k3, k4 = jax.random.split(key, 4)
    logit_scale = jnp.float32(1.0 / 0.07)

    # Small paired image/text embedding batches.
    img_a = jax.random.normal(k1, (8, 32), dtype=jnp.float32)
    txt_a = jax.random.normal(k2, (8, 32), dtype=jnp.float32)
    img_b = jax.random.normal(k3, (200, 48), dtype=jnp.float32)
    txt_b = jax.random.normal(k4, (200, 48), dtype=jnp.float32)

    ref_a = _reference_margin_clip_loss(img_a, txt_a, logit_scale)
    ref_b = _reference_margin_clip_loss(img_b, txt_b, logit_scale)

    # Fused (single-matmul) path in f32 and in the default bf16 compute dtype.
    loss_a_f32, _ = margin_clip_loss(img_a, txt_a, logit_scale, compute_dtype=jnp.float32)
    loss_a_bf16, _ = margin_clip_loss(img_a, txt_a, logit_scale)

    # Row-tiled path, forced: N=200 pads to 256 with tm=128 -> 2 tiles; the second tile
    # and the 56 padded rows/columns exercise the row/column masks.
    loss_b_tiled, _ = margin_clip_loss(img_b, txt_b, logit_scale,
                                       compute_dtype=jnp.float32,
                                       max_fused_n=0, row_tile=128)
    loss_b_fused, _ = margin_clip_loss(img_b, txt_b, logit_scale,
                                       compute_dtype=jnp.float32)

    jax.block_until_ready((loss_a_f32, loss_a_bf16, loss_b_tiled, loss_b_fused))

    def check(name, got, want, rtol, atol):
        got_f, want_f = float(got), float(want)
        assert math.isfinite(got_f), f"{name}: non-finite loss {got_f}"
        assert abs(got_f - want_f) <= atol + rtol * abs(want_f), (
            f"{name}: got {got_f}, want {want_f}")

    check("fused f32 vs reference", loss_a_f32, ref_a, rtol=3e-2, atol=3e-2)
    check("fused bf16 vs reference", loss_a_bf16, ref_a, rtol=5e-2, atol=8e-2)
    check("tiled f32 vs reference", loss_b_tiled, ref_b, rtol=3e-2, atol=3e-2)
    check("tiled vs fused (pad/mask consistency)", loss_b_tiled, loss_b_fused,
          rtol=1e-3, atol=1e-3)
    print("KERNEL_OK")
</pallas_src>

<mosaic_0001>
module attributes {stable_mosaic.version = 11 : i64} {
  func.func @_clip_aam_fused_kernel(%arg0: memref<8x128xf32, #tpu.memory_space<vmem>>, %arg1: memref<8x128xf32, #tpu.memory_space<vmem>>, %arg2: memref<8x1xf32, #tpu.memory_space<vmem>>, %arg3: memref<1x8xf32, #tpu.memory_space<vmem>>, %arg4: memref<1x1xf32, #tpu.memory_space<smem>>) attributes {dimension_semantics = [], scalar_prefetch = 0 : i64, scratch_operands = 0 : i64, tpu.core_type = #tpu.core_type<tc>} {
    %c0 = arith.constant 0 : index
    %c0_0 = arith.constant 0 : index
    %0 = vector.load %arg0[%c0, %c0_0] : memref<8x128xf32, #tpu.memory_space<vmem>>, vector<8x128xf32>
    %c0_1 = arith.constant 0 : index
    %c0_2 = arith.constant 0 : index
    %1 = vector.load %arg1[%c0_1, %c0_2] : memref<8x128xf32, #tpu.memory_space<vmem>>, vector<8x128xf32>
    %cst = arith.constant dense<0.000000e+00> : vector<8x8xf32>
    %2 = tpu.matmul %0, %1, %cst {dimension_numbers = #tpu.dot_dimension_numbers<[1], [1], [0], [0], [0, 0, 1, 0], [], []>} : vector<8x128xf32>, vector<8x128xf32>, vector<8x8xf32> -> vector<8x8xf32>
    %c0_3 = arith.constant 0 : index
    %c0_4 = arith.constant 0 : index
    %3 = vector.load %arg2[%c0_3, %c0_4] : memref<8x1xf32, #tpu.memory_space<vmem>>, vector<8x1xf32>
    %4 = arith.mulf %2, %2 : vector<8x8xf32>
    %cst_5 = arith.constant dense<0.000000e+00> : vector<8xf32>
    %5 = vector.multi_reduction <add>, %4, %cst_5 [1] : vector<8x8xf32> to vector<8xf32>
    %6 = vector.shape_cast %5 : vector<8xf32> to vector<8x1xf32>
    %cst_6 = arith.constant 1.000000e-24 : f32
    %7 = vector.broadcast %cst_6 : f32 to vector<8x1xf32>
    %8 = arith.maximumf %6, %7 : vector<8x1xf32>
    %9 = math.rsqrt %8 : vector<8x1xf32>
    %cst_7 = arith.constant 1.000000e+01 : f32
    %10 = vector.broadcast %cst_7 : f32 to vector<8x1xf32>
    %11 = arith.mulf %10, %9 : vector<8x1xf32>
    %12 = vector.broadcast %11 : vector<8x1xf32> to vector<8x8xf32>
    %13 = arith.mulf %2, %12 : vector<8x8xf32>
    %14 = arith.mulf %3, %9 : vector<8x1xf32>
    %15 = arith.mulf %14, %14 : vector<8x1xf32>
    %cst_8 = arith.constant 1.000000e+00 : f32
    %16 = vector.broadcast %cst_8 : f32 to vector<8x1xf32>
    %17 = arith.subf %16, %15 : vector<8x1xf32>
    %cst_9 = arith.constant 0.000000e+00 : f32
    %cst_10 = arith.constant 1.000000e+00 : f32
    %18 = vector.broadcast %cst_9 : f32 to vector<8x1xf32>
    %19 = arith.maximumf %18, %17 : vector<8x1xf32>
    %20 = vector.broadcast %cst_10 : f32 to vector<8x1xf32>
    %21 = arith.minimumf %20, %19 : vector<8x1xf32>
    %22 = math.sqrt %21 : vector<8x1xf32>
    %cst_11 = arith.constant -0.980066597 : f32
    %23 = vector.broadcast %cst_11 : f32 to vector<8x1xf32>
    %24 = arith.subf %14, %23 : vector<8x1xf32>
    %cst_12 = arith.constant 0.000000e+00 : f32
    %25 = vector.broadcast %cst_12 : f32 to vector<8x1xf32>
    %26 = arith.cmpf ogt, %24, %25 : vector<8x1xf32>
    %cst_13 = arith.constant 0.980066597 : f32
    %27 = vector.broadcast %cst_13 : f32 to vector<8x1xf32>
    %28 = arith.mulf %14, %27 : vector<8x1xf32>
    %cst_14 = arith.constant 0.198669329 : f32
    %29 = vector.broadcast %cst_14 : f32 to vector<8x1xf32>
    %30 = arith.mulf %22, %29 : vector<8x1xf32>
    %31 = arith.subf %28, %30 : vector<8x1xf32>
    %cst_15 = arith.constant 0.0397338644 : f32
    %32 = vector.broadcast %cst_15 : f32 to vector<8x1xf32>
    %33 = arith.subf %14, %32 : vector<8x1xf32>
    %34 = arith.select %26, %31, %33 : vector<8x1xi1>, vector<8x1xf32>
    %cst_16 = arith.constant dense<0xFF800000> : vector<8xf32>
    %35 = vector.multi_reduction <maximumf>, %13, %cst_16 [1] : vector<8x8xf32> to vector<8xf32>
    %36 = vector.shape_cast %35 : vector<8xf32> to vector<8x1xf32>
    %37 = vector.broadcast %36 : vector<8x1xf32> to vector<8x8xf32>
    %38 = arith.subf %13, %37 : vector<8x8xf32>
    %39 = math.exp %38 : vector<8x8xf32>
    %cst_17 = arith.constant dense<0.000000e+00> : vector<8xf32>
    %40 = vector.multi_reduction <add>, %39, %cst_17 [1] : vector<8x8xf32> to vector<8xf32>
    %41 = vector.shape_cast %40 : vector<8xf32> to vector<8x1xf32>
    %cst_18 = arith.constant 1.000000e+01 : f32
    %42 = vector.broadcast %cst_18 : f32 to vector<8x1xf32>
    %43 = arith.mulf %42, %34 : vector<8x1xf32>
    %44 = arith.subf %43, %36 : vector<8x1xf32>
    %45 = math.exp %44 : vector<8x1xf32>
    %cst_19 = arith.constant 1.000000e+01 : f32
    %46 = vector.broadcast %cst_19 : f32 to vector<8x1xf32>
    %47 = arith.mulf %46, %14 : vector<8x1xf32>
    %48 = arith.subf %47, %36 : vector<8x1xf32>
    %49 = math.exp %48 : vector<8x1xf32>
    %50 = arith.subf %45, %49 : vector<8x1xf32>
    %51 = arith.addf %41, %50 : vector<8x1xf32>
    %52 = math.log %51 : vector<8x1xf32>
    %53 = arith.addf %36, %52 : vector<8x1xf32>
    %cst_20 = arith.constant 1.000000e+01 : f32
    %54 = vector.broadcast %cst_20 : f32 to vector<8x1xf32>
    %55 = arith.mulf %54, %34 : vector<8x1xf32>
    %56 = arith.subf %53, %55 : vector<8x1xf32>
    %57 = vector.shape_cast %56 : vector<8x1xf32> to vector<1x8x1xf32>
    %cst_21 = arith.constant dense<0.000000e+00> : vector<1xf32>
    %58 = vector.multi_reduction <add>, %57, %cst_21 [1, 2] : vector<1x8x1xf32> to vector<1xf32>
    %59 = vector.shape_cast %58 : vector<1xf32> to vector<1x1x1xf32>
    %60 = vector.extract %59[0, 0, 0] : f32 from vector<1x1x1xf32>
    %c0_22 = arith.constant 0 : index
    %c0_23 = arith.constant 0 : index
    %61 = vector.load %arg3[%c0_22, %c0_23] : memref<1x8xf32, #tpu.memory_space<vmem>>, vector<1x8xf32>
    %62 = arith.mulf %2, %2 : vector<8x8xf32>
    %cst_24 = arith.constant dense<0.000000e+00> : vector<8xf32>
    %63 = vector.multi_reduction <add>, %62, %cst_24 [0] : vector<8x8xf32> to vector<8xf32>
    %64 = vector.shape_cast %63 : vector<8xf32> to vector<1x8xf32>
    %cst_25 = arith.constant 1.000000e-24 : f32
    %65 = vector.broadcast %cst_25 : f32 to vector<1x8xf32>
    %66 = arith.maximumf %64, %65 : vector<1x8xf32>
    %67 = math.rsqrt %66 : vector<1x8xf32>
    %cst_26 = arith.constant 1.000000e+01 : f32
    %68 = vector.broadcast %cst_26 : f32 to vector<1x8xf32>
    %69 = arith.mulf %68, %67 : vector<1x8xf32>
    %70 = vector.broadcast %69 : vector<1x8xf32> to vector<8x8xf32>
    %71 = arith.mulf %2, %70 : vector<8x8xf32>
    %72 = arith.mulf %61, %67 : vector<1x8xf32>
    %73 = arith.mulf %72, %72 : vector<1x8xf32>
    %cst_27 = arith.constant 1.000000e+00 : f32
    %74 = vector.broadcast %cst_27 : f32 to vector<1x8xf32>
    %75 = arith.subf %74, %73 : vector<1x8xf32>
    %cst_28 = arith.constant 0.000000e+00 : f32
    %cst_29 = arith.constant 1.000000e+00 : f32
    %76 = vector.broadcast %cst_28 : f32 to vector<1x8xf32>
    %77 = arith.maximumf %76, %75 : vector<1x8xf32>
    %78 = vector.broadcast %cst_29 : f32 to vector<1x8xf32>
    %79 = arith.minimumf %78, %77 : vector<1x8xf32>
    %80 = math.sqrt %79 : vector<1x8xf32>
    %cst_30 = arith.constant -0.980066597 : f32
    %81 = vector.broadcast %cst_30 : f32 to vector<1x8xf32>
    %82 = arith.subf %72, %81 : vector<1x8xf32>
    %cst_31 = arith.constant 0.000000e+00 : f32
    %83 = vector.broadcast %cst_31 : f32 to vector<1x8xf32>
    %84 = arith.cmpf ogt, %82, %83 : vector<1x8xf32>
    %cst_32 = arith.constant 0.980066597 : f32
    %85 = vector.broadcast %cst_32 : f32 to vector<1x8xf32>
    %86 = arith.mulf %72, %85 : vector<1x8xf32>
    %cst_33 = arith.constant 0.198669329 : f32
    %87 = vector.broadcast %cst_33 : f32 to vector<1x8xf32>
    %88 = arith.mulf %80, %87 : vector<1x8xf32>
    %89 = arith.subf %86, %88 : vector<1x8xf32>
    %cst_34 = arith.constant 0.0397338644 : f32
    %90 = vector.broadcast %cst_34 : f32 to vector<1x8xf32>
    %91 = arith.subf %72, %90 : vector<1x8xf32>
    %92 = arith.select %84, %89, %91 : vector<1x8xi1>, vector<1x8xf32>
    %cst_35 = arith.constant dense<0xFF800000> : vector<8xf32>
    %93 = vector.multi_reduction <maximumf>, %71, %cst_35 [0] : vector<8x8xf32> to vector<8xf32>
    %94 = vector.shape_cast %93 : vector<8xf32> to vector<1x8xf32>
    %95 = vector.broadcast %94 : vector<1x8xf32> to vector<8x8xf32>
    %96 = arith.subf %71, %95 : vector<8x8xf32>
    %97 = math.exp %96 : vector<8x8xf32>
    %cst_36 = arith.constant dense<0.000000e+00> : vector<8xf32>
    %98 = vector.multi_reduction <add>, %97, %cst_36 [0] : vector<8x8xf32> to vector<8xf32>
    %99 = vector.shape_cast %98 : vector<8xf32> to vector<1x8xf32>
    %cst_37 = arith.constant 1.000000e+01 : f32
    %100 = vector.broadcast %cst_37 : f32 to vector<1x8xf32>
    %101 = arith.mulf %100, %92 : vector<1x8xf32>
    %102 = arith.subf %101, %94 : vector<1x8xf32>
    %103 = math.exp %102 : vector<1x8xf32>
    %cst_38 = arith.constant 1.000000e+01 : f32
    %104 = vector.broadcast %cst_38 : f32 to vector<1x8xf32>
    %105 = arith.mulf %104, %72 : vector<1x8xf32>
    %106 = arith.subf %105, %94 : vector<1x8xf32>
    %107 = math.exp %106 : vector<1x8xf32>
    %108 = arith.subf %103, %107 : vector<1x8xf32>
    %109 = arith.addf %99, %108 : vector<1x8xf32>
    %110 = math.log %109 : vector<1x8xf32>
    %111 = arith.addf %94, %110 : vector<1x8xf32>
    %cst_39 = arith.constant 1.000000e+01 : f32
    %112 = vector.broadcast %cst_39 : f32 to vector<1x8xf32>
    %113 = arith.mulf %112, %92 : vector<1x8xf32>
    %114 = arith.subf %111, %113 : vector<1x8xf32>
    %115 = vector.shape_cast %114 : vector<1x8xf32> to vector<1x1x8xf32>
    %cst_40 = arith.constant dense<0.000000e+00> : vector<1xf32>
    %116 = vector.multi_reduction <add>, %115, %cst_40 [1, 2] : vector<1x1x8xf32> to vector<1xf32>
    %117 = vector.shape_cast %116 : vector<1xf32> to vector<1x1x1xf32>
    %118 = vector.extract %117[0, 0, 0] : f32 from vector<1x1x1xf32>
    %119 = arith.addf %60, %118 : f32
    %cst_41 = arith.constant 1.600000e+01 : f32
    %120 = arith.divf %119, %cst_41 : f32
    %c0_42 = arith.constant 0 : index
    %c0_43 = arith.constant 0 : index
    %121 = memref.load %arg4[%c0_42, %c0_43] : memref<1x1xf32, #tpu.memory_space<smem>>
    memref.store %120, %arg4[%c0_42, %c0_43] : memref<1x1xf32, #tpu.memory_space<smem>>
    return
  }
}

</mosaic_0001>

<llo_original>
// kernel: tpu_custom_call.1
$region0: #{tpu_custom_call.1}
  #allocation0 [shape = 'u32[]', space=smem, size = 0x4, offset = 0x4, fixed_abs, tag = 'smem constant byte address 0x4 - core index']
  #allocation1 [shape = 'u32[144,128]{1,0:T(1,128)}', space=vmem, size = 0x12000, scoped, tag = 'internal scratch']
  %s0 = inlined_call_operand.vmem [shape: f32[8,128], index: 0, kind: input, shape index: {}]
  %s1 = inlined_call_operand.hbm [shape: f32[8,128], index: 1, kind: input, shape index: {}]
  %s2 = inlined_call_operand.vmem [shape: f32[8,1], index: 2, kind: input, shape index: {}]
  %s3 = inlined_call_operand.vmem [shape: f32[1,8], index: 3, kind: input, shape index: {}]
  %s4 = inlined_call_operand.hbm [shape: f32[1,1], index: 4, kind: output, shape index: {}]
  %s5 = sld [smem:[#allocation0]]
  $region30: #{tpu_custom_call.1} parent=0
    _
  %s7 = ssub.s32 1, %s5
  %s8 = scalar_select 0, %s7, %s5
  $region1: #{tpu_custom_call.1} parent=0
    #allocation2 [shape = 'u8[4096]{0}', space=vmem, size = 0x1000, scoped, tag = 'input window, operand 1, single buffered']
    #allocation3 [shape = 's32[1]{0}', space=sflag, size = 0x4, scoped, tag = 'scoped memory for tpu_custom_call.1']
    #allocation4 [shape = 's32[1]{0}', space=sflag, size = 0x4, scoped, tag = 'scoped memory for tpu_custom_call.1']
    #allocation5 [shape = 'u8[512]{0}', space=smem, size = 0x200, scoped, tag = 'output window, operand 0, single buffered']
    %9 = vsyncpa [#allocation3], 0
    %10 = vsyncpa [#allocation4], 0
    // Predicated region
    $region2: #{tpu_custom_call.1} parent=1 // pred_check
      _
    $region3: #{tpu_custom_call.1} parent=1 // pred_check_branch
      %12 = sbr.rel (0) target = $region5
    $region4: #{tpu_custom_call.1} parent=1 // pred_region
      _
    $region5: #{tpu_custom_call.1} parent=1 // pred_fallthru
      _
    // Predicated region
    $region6: #{tpu_custom_call.1} parent=1 // pred_check
      _
    $region7: #{tpu_custom_call.1} parent=1 // pred_check_branch
      %14 = sbr.rel (0) target = $region9
    $region8: #{tpu_custom_call.1} parent=1 // pred_region
      %s16 = ssub.s32 128, 128
      %17 = vsyncadd [#allocation3], %s16
      %s19 = sshll.u32 [#allocation2], 4
      %s20 = int_to_ptr.vmem [resolvable:$true] %s19
      %22 = dma.hbm_to_vmem [thread:$0]  %s1, 128, %s20, [#allocation3]
    $region9: #{tpu_custom_call.1} parent=1 // pred_fallthru
      _
    // Predicated region
    $region10: #{tpu_custom_call.1} parent=1 // pred_check
      _
    $region11: #{tpu_custom_call.1} parent=1 // pred_check_branch
      %24 = sbr.rel (0) target = $region13
    $region12: #{tpu_custom_call.1} parent=1 // pred_region
      _
    $region13: #{tpu_custom_call.1} parent=1 // pred_fallthru
      _
    // Predicated region
    $region14: #{tpu_custom_call.1} parent=1 // pred_check
      _
    $region15: #{tpu_custom_call.1} parent=1 // pred_check_branch
      %26 = sbr.rel (0) target = $region17
    $region16: #{tpu_custom_call.1} parent=1 // pred_region
      _
    $region17: #{tpu_custom_call.1} parent=1 // pred_fallthru
      _
    // Predicated region
    $region18: #{tpu_custom_call.1} parent=1 // pred_check
      _
    $region19: #{tpu_custom_call.1} parent=1 // pred_check_branch
      %28 = sbr.rel (0) target = $region21
    $region20: #{tpu_custom_call.1} parent=1 // pred_region
      %29 = dma.done [#allocation3], 128
    $region21: #{tpu_custom_call.1} parent=1 // pred_fallthru
      _
    %v30 = vld [vmem:[%s0] sm:$0xff]
    %v31 = vld [vmem:[#allocation2] sm:$0xff]
    %32 = vmatprep.subr.mxu0 0.0
    %33 = vmatpush1.xpose.msra.mxu0 %v31
    %34 = vmatprep.subr.mxu0 0.0
    %35 = vmatpush1.xpose.msra.mxu0 0.0
    %36 = vmatprep.subr.mxu0 0.0
    %37 = vmatpush1.xpose.msra.mxu0 0.0
    %38 = vmatprep.subr.mxu0 0.0
    %39 = vmatpush1.xpose.msra.mxu0 0.0
    %40 = vmatprep.subr.mxu0 0.0
    %41 = vmatpush1.xpose.msra.mxu0 0.0
    %42 = vmatprep.subr.mxu0 0.0
    %43 = vmatpush1.xpose.msra.mxu0 0.0
    %44 = vmatprep.subr.mxu0 0.0
    %45 = vmatpush1.xpose.msra.mxu0 0.0
    %46 = vmatprep.subr.mxu0 0.0
    %47 = vmatpush1.xpose.msra.mxu0 0.0
    %48 = vmatprep.subr.mxu0 0.0
    %49 = vmatpush1.xpose.msra.mxu0 0.0
    %50 = vmatprep.subr.mxu0 0.0
    %51 = vmatpush1.xpose.msra.mxu0 0.0
    %52 = vmatprep.subr.mxu0 0.0
    %53 = vmatpush1.xpose.msra.mxu0 0.0
    %54 = vmatprep.subr.mxu0 0.0
    %55 = vmatpush1.xpose.msra.mxu0 0.0
    %56 = vmatprep.subr.mxu0 0.0
    %57 = vmatpush1.xpose.msra.mxu0 0.0
    %58 = vmatprep.subr.mxu0 0.0
    %59 = vmatpush1.xpose.msra.mxu0 0.0
    %60 = vmatprep.subr.mxu0 0.0
    %61 = vmatpush1.xpose.msra.mxu0 0.0
    %62 = vmatprep.subr.mxu0 0.0
    %63 = vmatpush1.xpose.msra.mxu0 0.0
    %64 = vmatprep.subr.mxu0 0.0
    %65 = vmatpush1.xpose.msra.mxu0 0.0
    %66 = vmatprep.subr.mxu0 0.0
    %67 = vmatpush1.xpose.msra.mxu0 0.0
    %68 = vmatprep.subr.mxu0 0.0
    %69 = vmatpush1.xpose.msra.mxu0 0.0
    %70 = vmatprep.subr.mxu0 0.0
    %71 = vmatpush1.xpose.msra.mxu0 0.0
    %72 = vmatprep.subr.mxu0 0.0
    %73 = vmatpush1.xpose.msra.mxu0 0.0
    %74 = vmatprep.subr.mxu0 0.0
    %75 = vmatpush1.xpose.msra.mxu0 0.0
    %76 = vmatprep.subr.mxu0 0.0
    %77 = vmatpush1.xpose.msra.mxu0 0.0
    %78 = vmatprep.subr.mxu0 0.0
    %79 = vmatpush1.xpose.msra.mxu0 0.0
    %80 = vmatprep.subr.mxu0 0.0
    %81 = vmatpush1.xpose.msra.mxu0 0.0
    %82 = vmatprep.subr.mxu0 0.0
    %83 = vmatpush1.xpose.msra.mxu0 0.0
    %84 = vmatprep.subr.mxu0 0.0
    %85 = vmatpush1.xpose.msra.mxu0 0.0
    %86 = vmatprep.subr.mxu0 0.0
    %87 = vmatpush1.xpose.msra.mxu0 0.0
    %88 = vmatprep.subr.mxu0 0.0
    %89 = vmatpush1.xpose.msra.mxu0 0.0
    %90 = vmatprep.subr.mxu0 0.0
    %91 = vmatpush1.xpose.msra.mxu0 0.0
    %92 = vmatprep.subr.mxu0 0.0
    %93 = vmatpush1.xpose.msra.mxu0 0.0
    %94 = vmatprep.subr.mxu0 0.0
    %95 = vmatpush1.xpose.msra.mxu0 0.0
    %96 = vmatprep.mubr.f32.mxu0 0.0
    %97 = vmatmul.mubr.f32.gmra.mrb[0].mxu0 %v30
    %v98 = vpop.f32.mrb[0].mxu0
    %v99 = vadd.f32 0.0, %v98
    %v100 = vpop.f32.mrb[0].mxu0
    %101 = vdwg.mxu0
    %v102 = vld [vmem:[%s2] sm:$0xff]
    %v103 = vmul.f32 %v99, %v99
    %vm104 = vcmask 64512
    %v105 = vsel %vm104, %v103, 0.0
    %106 = vadd.xlane.f32.xlu0 %v105
    %v107 = vpop.xlane.xlu0 %106
    %v108 = vmax.f32 %v107, 1e-24
    %v109 = vrsqrt.pop %v108
    %v110 = vmul.f32 %v109, 10.0
    %v111 = vmul.f32 %v99, %v110
    %v112 = vmul.f32 %v102, %v109
    %v113 = vmul.f32 %v112, %v112
    %v114 = vsub.f32 1.0, %v113
    %v115 = vmax.f32 %v114, 0.0
    %v116 = vmin.f32 %v115, 1.0
    %v117 = vrsqrt.pop %v116
    %v118 = vmul.f32 %v116, %v117
    %vm119 = vcmp.eq.f32.partialorder %v116, inf
    %v120 = vsel %vm119, %v116, %v118
    %vm121 = vcmp.eq.f32.partialorder %v116, 0.0
    %v122 = vand.u32 %v116, 2147483648
    %v123 = vsel %vm121, %v122, %v120
    %v124 = vsub.f32 %v112, -0.9800666
    %vm125 = vcmp.gt.f32.partialorder %v124, 0.0
    %v126 = vmul.f32 %v112, 0.9800666
    %v127 = vmul.f32 %v123, 0.19866933
    %v128 = vsub.f32 %v126, %v127
    %v129 = vsub.f32 %v112, 0.039733864
    %v130 = vsel %vm125, %v128, %v129
    %v131 = vsel %vm104, %v111, -inf
    %132 = vmax.xlane.f32.xlu0 %v131
    %v133 = vpop.xlane.xlu0 %132
    %v134 = vsub.f32 %v111, %v133
    %v135 = vmul.f32 %v134, 1.442695
    %v136 = vpow.pop %v135
    %v137 = vsel %vm104, %v136, 0.0
    %138 = vadd.xlane.f32.xlu0 %v137
    %v139 = vpop.xlane.xlu0 %138
    %v140 = vmul.f32 %v130, 10.0
    %v141 = vsub.f32 %v140, %v133
    %v142 = vmul.f32 %v141, 1.442695
    %v143 = vpow.pop %v142
    %v144 = vmul.f32 %v112, 10.0
    %v145 = vsub.f32 %v144, %v133
    %v146 = vmul.f32 %v145, 1.442695
    %v147 = vpow.pop %v146
    %v148 = vsub.f32 %v143, %v147
    %v149 = vadd.f32 %v139, %v148
    %v150 = vlog2.pop %v149
    %v151 = vmul.f32 %v150, 0.6931472
    %v152 = vadd.f32 %v133, %v151
    %v153 = vsub.f32 %v152, %v140
    %vm154 = vcmask 7168
    %v155 = vsel %vm154, %v153, 0.0
    %156 = vadd.xlane.f32.xlu0 %v155
    %v157 = vpop.xlane.xlu0 %156
    %v158 = vrot.slane %v157, 4
    %v159 = vadd.f32 %v157, %v158
    %v160 = vrot.slane %v159, 2
    %v161 = vadd.f32 %v159, %v160
    %v162 = vrot.slane %v161, 1
    %v163 = vadd.f32 %v161, %v162
    %s164 = vtos %v163
    %v165 = vld [vmem:[%s3] sm:$0x1]
    %v166 = vrot.slane %v105, 4
    %v167 = vadd.f32 %v105, %v166
    %v168 = vrot.slane %v167, 2
    %v169 = vadd.f32 %v167, %v168
    %v170 = vrot.slane %v169, 1
    %v171 = vadd.f32 %v169, %v170
    %v172 = vmax.f32 %v171, 1e-24
    %v173 = vrsqrt.pop %v172
    %v174 = vmul.f32 %v173, 10.0
    %v175 = vmul.f32 %v99, %v174
    %v176 = vmul.f32 %v165, %v173
    %v177 = vmul.f32 %v176, %v176
    %v178 = vsub.f32 1.0, %v177
    %v179 = vmax.f32 %v178, 0.0
    %v180 = vmin.f32 %v179, 1.0
    %v181 = vrsqrt.pop %v180
    %v182 = vmul.f32 %v180, %v181
    %vm183 = vcmp.eq.f32.partialorder %v180, inf
    %v184 = vsel %vm183, %v180, %v182
    %vm185 = vcmp.eq.f32.partialorder %v180, 0.0
    %v186 = vand.u32 %v180, 2147483648
    %v187 = vsel %vm185, %v186, %v184
    %v188 = vsub.f32 %v176, -0.9800666
    %vm189 = vcmp.gt.f32.partialorder %v188, 0.0
    %v190 = vmul.f32 %v176, 0.9800666
    %v191 = vmul.f32 %v187, 0.19866933
    %v192 = vsub.f32 %v190, %v191
    %v193 = vsub.f32 %v176, 0.039733864
    %v194 = vsel %vm189, %v192, %v193
    %v195 = vsel %vm104, %v175, -inf
    %v196 = vrot.slane %v195, 4
    %v197 = vmax.f32 %v195, %v196
    %v198 = vrot.slane %v197, 2
    %v199 = vmax.f32 %v197, %v198
    %v200 = vrot.slane %v199, 1
    %v201 = vmax.f32 %v199, %v200
    %v202 = vsub.f32 %v175, %v201
    %v203 = vmul.f32 %v202, 1.442695
    %v204 = vpow.pop %v203
    %v205 = vsel %vm104, %v204, 0.0
    %v206 = vrot.slane %v205, 4
    %v207 = vadd.f32 %v205, %v206
    %v208 = vrot.slane %v207, 2
    %v209 = vadd.f32 %v207, %v208
    %v210 = vrot.slane %v209, 1
    %v211 = vadd.f32 %v209, %v210
    %v212 = vmul.f32 %v194, 10.0
    %v213 = vsub.f32 %v212, %v201
    %v214 = vmul.f32 %v213, 1.442695
    %v215 = vpow.pop %v214
    %v216 = vmul.f32 %v176, 10.0
    %v217 = vsub.f32 %v216, %v201
    %v218 = vmul.f32 %v217, 1.442695
    %v219 = vpow.pop %v218
    %v220 = vsub.f32 %v215, %v219
    %v221 = vadd.f32 %v211, %v220
    %v222 = vlog2.pop %v221
    %v223 = vmul.f32 %v222, 0.6931472
    %v224 = vadd.f32 %v201, %v223
    %v225 = vsub.f32 %v224, %v212
    %vm226 = vcmask 57344
    %v227 = vsel %vm226, %v225, 0.0
    %228 = vadd.xlane.f32.xlu0 %v227
    %v229 = vpop.xlane.xlu0 %228
    %v230 = vrot.slane %v229, 4
    %v231 = vadd.f32 %v229, %v230
    %v232 = vrot.slane %v231, 2
    %v233 = vadd.f32 %v231, %v232
    %v234 = vrot.slane %v233, 1
    %v235 = vadd.f32 %v233, %v234
    %s236 = vtos %v235
    %s237 = sadd.f32 %s164, %s236
    %v238 = vrcp.pop 16.0
    %s239 = vtos %v238
    %s240 = smul.f32 %s237, %s239
    %s241 = scalar_lea.smem [#allocation5], 0
    %242 = sst [smem:[%s241]] %s240
    // Predicated region
    $region22: #{tpu_custom_call.1} parent=1 // pred_check
      _
    $region23: #{tpu_custom_call.1} parent=1 // pred_check_branch
      %244 = sbr.rel (0) target = $region25
    $region24: #{tpu_custom_call.1} parent=1 // pred_region
      %s246 = ssub.s32 16, 16
      %247 = vsyncadd [#allocation4], %s246
      %250 = dma.smem_to_hbm [#allocation5], 16, %s4, [#allocation4]
    $region25: #{tpu_custom_call.1} parent=1 // pred_fallthru
      _
    // Predicated region
    $region26: #{tpu_custom_call.1} parent=1 // pred_check
      _
    $region27: #{tpu_custom_call.1} parent=1 // pred_check_branch
      %252 = sbr.rel (0) target = $region29
    $region28: #{tpu_custom_call.1} parent=1 // pred_region
      %253 = dma.done [#allocation4], 16
    $region29: #{tpu_custom_call.1} parent=1 // pred_fallthru
      _
    %254 = sfence
    %255 = vsyncpa [#allocation3], 1
    %256 = vsyncpa [#allocation4], 1

</llo_original>
